<compile_context>
chip_gen: v6e
topology: v6e:2x2x1
jax: 0.10.0
libtpu: 0.0.40
codegen_flags: <defaults>
</compile_context>

<pallas_src>
import jax
import jax.numpy as jnp
from jax.experimental import pallas as pl
from jax.experimental.pallas import tpu as pltpu

LN_EPS = 1e-5                 # nn.LayerNorm default eps
MAX_TILE_TOKENS = 512         # tokens per grid step (sweep 512-1024 per perf review)
ONEHOT_MAX_VOCAB = 512        # above this the DMA row-gather path wins


def _round_up(x: int, m: int) -> int:
    return ((x + m - 1) // m) * m


def _vmem_capacity_bytes() -> int:
    try:
        return int(pltpu.get_tpu_info().vmem_capacity_bytes)
    except Exception:  # pragma: no cover - conservative fallback (v7x per-TC size)
        return 64 << 20


def _layernorm_rows(x, gamma, beta):
    """Two-pass LayerNorm over the last dim (matches nn.LayerNorm numerics)."""
    d_inv = 1.0 / x.shape[-1]
    mean = jnp.sum(x, axis=-1, keepdims=True) * d_inv
    centered = x - mean
    var = jnp.sum(centered * centered, axis=-1, keepdims=True) * d_inv
    return centered * jax.lax.rsqrt(var + LN_EPS) * gamma + beta


def _store_lane_packed(out_ref, y):
    """Store (tile, D) rows into the (possibly lane-packed) output block.

    When D < 128 the output block is (tile // group, 128) with `group` consecutive tokens
    per 128-lane row, so the VMEM->HBM writeback is dense. The repack uses `group` tiny
    selection matmuls (row r of block g selects token r*group+g) — only iota / compare /
    dot / static lane-slice stores, no vector relayout.
    """
    tile, d = y.shape
    if tuple(out_ref.shape) == (tile, d):
        out_ref[...] = y.astype(out_ref.dtype)
        return
    rows = out_ref.shape[0]
    group = tile // rows
    row_iota = jax.lax.broadcasted_iota(jnp.int32, (rows, tile), 0)
    col_iota = jax.lax.broadcasted_iota(jnp.int32, (rows, tile), 1)
    for g in range(group):
        sel = (col_iota == row_iota * group + g).astype(y.dtype)          # (rows, tile)
        out_ref[:, g * d:(g + 1) * d] = jnp.dot(
            sel, y, preferred_element_type=jnp.float32).astype(out_ref.dtype)


def _emb_ln_onehot_kernel(ids_ref, table_ref, gamma_ref, beta_ref, out_ref):
    """Small-vocab path: embedding gather as one-hot @ table on the MXU, fused LayerNorm."""
    ids = ids_ref[...]                                                    # (tile, 1) int32
    v = table_ref.shape[0]
    # Single (1, V) lane iota; broadcasting against the (tile, 1) ids column builds the
    # (tile, V) one-hot without materializing a (tile, V) iota every grid step.
    vocab_iota = jax.lax.broadcasted_iota(jnp.int32, (1, v), 1)
    onehot = (ids == vocab_iota).astype(jnp.float32)                      # (tile, V)
    # Row 0 of the table is zero (padding_idx=0), so id==0 -> zero embedding like PyTorch.
    emb = jnp.dot(onehot, table_ref[...], preferred_element_type=jnp.float32)
    y = _layernorm_rows(emb, gamma_ref[...], beta_ref[...])
    _store_lane_packed(out_ref, y)


def _emb_ln_gather_kernel(ids_smem, table_hbm, gamma_ref, beta_ref, out_ref, gbuf, sems):
    """Large-vocab path: per-row DMA gather from the HBM-resident table, double-buffered
    across grid steps (prefetch tile i+1 while normalizing tile i)."""
    _, tile_t, _ = gbuf.shape
    step = pl.program_id(0)
    nsteps = pl.num_programs(0)

    def start_gather(s, slot):
        base = s * tile_t

        @pl.loop(0, tile_t)
        def _(t):
            row = ids_smem[base + t]
            pltpu.make_async_copy(
                table_hbm.at[pl.ds(row, 1), :],
                gbuf.at[slot, pl.ds(t, 1), :],
                sems.at[slot],
            ).start()

    def wait_gather(slot):
        @pl.loop(0, tile_t)
        def _(t):
            # Dummy same-shaped descriptor: the wait only needs the semaphore + row size.
            pltpu.make_async_copy(
                table_hbm.at[pl.ds(0, 1), :],
                gbuf.at[slot, pl.ds(0, 1), :],
                sems.at[slot],
            ).wait()

    @pl.when(step == 0)
    def _():
        start_gather(0, 0)                 # prime the pipeline

    slot = step % 2
    wait_gather(slot)

    @pl.when(step + 1 < nsteps)
    def _():
        start_gather(step + 1, 1 - slot)   # prefetch next tile's rows while we normalize

    emb = gbuf[slot]                                                      # (tile, D) f32
    y = _layernorm_rows(emb, gamma_ref[...], beta_ref[...])
    _store_lane_packed(out_ref, y)


@jax.jit
def embedding_block_forward(ids, table, gamma, beta):
    """ids: (B, S) int -> (B, S, D): nn.Embedding(padding_idx=0) + nn.LayerNorm."""
    B, S = ids.shape
    V, D = table.shape
    N = B * S
    out_dtype = table.dtype

    # Lane-dense packing factor for the output (group tokens per 128-lane row when D < 128).
    if D < 128 and 128 % D == 0 and 8 * (128 // D) <= MAX_TILE_TOKENS:
        group = 128 // D
    else:
        group = 1
    unit = 8 * group                       # token multiple keeping all blocks (8,128)-tileable

    n_pad = _round_up(N, unit)
    if n_pad <= MAX_TILE_TOKENS:
        tile_t = n_pad                     # single tile == full array
    else:
        tile_t = (MAX_TILE_TOKENS // unit) * unit
        n_pad = _round_up(N, tile_t)       # no post-kernel slice when B*S is tile-aligned
    num_tiles = n_pad // tile_t

    if group > 1:
        out_rows, out_cols, blk_rows = n_pad // group, 128, tile_t // group
    else:
        out_rows, out_cols, blk_rows = n_pad, D, tile_t
    out_shape = jax.ShapeDtypeStruct((out_rows, out_cols), out_dtype)
    out_block = (blk_rows, out_cols)

    flat_ids = ids.reshape(-1).astype(jnp.int32)
    if n_pad != N:
        flat_ids = jnp.pad(flat_ids, (0, n_pad - N))   # pad with id 0 (valid row, sliced off)

    gamma2 = gamma.reshape(1, D).astype(jnp.float32)
    beta2 = beta.reshape(1, D).astype(jnp.float32)
    table_f32 = table.astype(jnp.float32)

    # Strategy + VMEM budget (per-TensorCore capacity, minus headroom; no hard 64 MiB cap).
    cap = _vmem_capacity_bytes()
    itemsize = 4
    onehot_bytes = (V * D * itemsize                        # resident table (Buffered(1))
                    + 2 * tile_t * (1 + D) * itemsize       # double-buffered ids + out blocks
                    + 4 * tile_t * max(V, 128) * itemsize   # one-hot / emb / LN temporaries
                    + (2 << 20))
    gather_bytes = (4 * tile_t * max(D, 128) * itemsize     # gather scratch + out + temps
                    + (2 << 20))
    use_onehot = (V <= ONEHOT_MAX_VOCAB) and (onehot_bytes <= cap - (16 << 20))
    needed = onehot_bytes if use_onehot else gather_bytes
    vmem_limit = int(min(cap - (4 << 20), max(needed + (4 << 20), 32 << 20)))

    if use_onehot:
        grid_spec = pltpu.PrefetchScalarGridSpec(
            num_scalar_prefetch=0,
            grid=(num_tiles,),
            in_specs=[
                # Streamed token-id column, one block per grid step.
                pl.BlockSpec((tile_t, 1), lambda i: (i, 0)),
                # Constant-index residents: single-buffered so the table isn't doubled.
                pl.BlockSpec((V, D), lambda i: (0, 0), pipeline_mode=pl.Buffered(1)),
                pl.BlockSpec((1, D), lambda i: (0, 0), pipeline_mode=pl.Buffered(1)),
                pl.BlockSpec((1, D), lambda i: (0, 0), pipeline_mode=pl.Buffered(1)),
            ],
            out_specs=pl.BlockSpec(out_block, lambda i: (i, 0)),
        )
        out = pl.pallas_call(
            _emb_ln_onehot_kernel,
            out_shape=out_shape,
            grid_spec=grid_spec,
            compiler_params=pltpu.CompilerParams(
                dimension_semantics=("parallel",),
                vmem_limit_bytes=vmem_limit,
            ),
        )(flat_ids.reshape(n_pad, 1), table_f32, gamma2, beta2)
    else:
        grid_spec = pltpu.PrefetchScalarGridSpec(
            num_scalar_prefetch=1,                          # token ids -> SMEM
            grid=(num_tiles,),
            in_specs=[
                pl.BlockSpec(memory_space=pl.ANY),          # table stays in HBM
                pl.BlockSpec((1, D), lambda i, ids: (0, 0), pipeline_mode=pl.Buffered(1)),
                pl.BlockSpec((1, D), lambda i, ids: (0, 0), pipeline_mode=pl.Buffered(1)),
            ],
            out_specs=pl.BlockSpec(out_block, lambda i, ids: (i, 0)),
            scratch_shapes=[
                pltpu.VMEM((2, tile_t, D), jnp.float32),    # double-buffered row gather
                pltpu.SemaphoreType.DMA((2,)),
            ],
        )
        # Manual cross-step double-buffering assumes sequential grid execution -> "arbitrary".
        out = pl.pallas_call(
            _emb_ln_gather_kernel,
            out_shape=out_shape,
            grid_spec=grid_spec,
            compiler_params=pltpu.CompilerParams(
                dimension_semantics=("arbitrary",),
                vmem_limit_bytes=vmem_limit,
            ),
        )(flat_ids, table_f32, gamma2, beta2)

    out = out.reshape(n_pad, D)
    if n_pad != N:
        out = out[:N]   # only hit when B*S is not unit-aligned (no extra copy otherwise)
    return out.reshape(B, S, D).astype(out_dtype)


def _reference_forward(ids, table, gamma, beta):
    emb = jnp.take(table, ids, axis=0)
    mean = jnp.mean(emb, axis=-1, keepdims=True)
    var = jnp.mean((emb - mean) ** 2, axis=-1, keepdims=True)
    return (emb - mean) * jax.lax.rsqrt(var + LN_EPS) * gamma + beta


def _run_case(key, vocab_size, embedding_dim, batch, seq):
    k_tab, k_ids, k_g, k_b = jax.random.split(key, 4)
    table = jax.random.normal(k_tab, (vocab_size, embedding_dim), dtype=jnp.float32)
    table = table.at[0].set(0.0)                               # nn.Embedding padding_idx=0
    gamma = 1.0 + 0.1 * jax.random.normal(k_g, (embedding_dim,), dtype=jnp.float32)
    beta = 0.1 * jax.random.normal(k_b, (embedding_dim,), dtype=jnp.float32)
    ids = jax.random.randint(k_ids, (batch, seq), 0, vocab_size, dtype=jnp.int32)
    ids = ids.at[0, 0].set(0)                                  # exercise padding_idx=0 path

    out = jax.block_until_ready(embedding_block_forward(ids, table, gamma, beta))
    ref = _reference_forward(ids, table, gamma, beta)
    assert out.shape == (batch, seq, embedding_dim)
    assert jnp.allclose(out, ref, atol=1e-5, rtol=1e-5), (
        f"mismatch vs reference (V={vocab_size}, D={embedding_dim})")


if __name__ == "__main__":
    key = jax.random.PRNGKey(0)
    k1, k2 = jax.random.split(key)
    # Small config (module's intent): one-hot MXU path + lane-dense output (D=32 < 128).
    _run_case(k1, vocab_size=64, embedding_dim=32, batch=2, seq=8)
    # Larger vocab: exercises the SMEM-prefetch + HBM row-gather (manual DMA) path.
    _run_case(k2, vocab_size=2048, embedding_dim=128, batch=2, seq=8)
    print("KERNEL_OK")
</pallas_src>

<mosaic_0001>
module attributes {stable_mosaic.version = 11 : i64} {
  func.func @_emb_ln_onehot_kernel(%arg0: i32, %arg1: memref<32x1xi32, #tpu.memory_space<vmem>>, %arg2: memref<64x32xf32, #tpu.memory_space<vmem>>, %arg3: memref<1x32xf32, #tpu.memory_space<vmem>>, %arg4: memref<1x32xf32, #tpu.memory_space<vmem>>, %arg5: memref<8x128xf32, #tpu.memory_space<vmem>>) attributes {dimension_semantics = [#tpu.dimension_semantics<parallel>], iteration_bounds = array<i64: 1>, scalar_prefetch = 0 : i64, scratch_operands = 0 : i64, tpu.core_type = #tpu.core_type<tc>, window_params = [{transform_indices = @transform_0, window_bounds = array<i64: 32, 1>}, {pipeline_mode = #tpu.pipeline_mode<synchronous>, transform_indices = @transform_1, window_bounds = array<i64: 64, 32>}, {pipeline_mode = #tpu.pipeline_mode<synchronous>, transform_indices = @transform_2, window_bounds = array<i64: 1, 32>}, {pipeline_mode = #tpu.pipeline_mode<synchronous>, transform_indices = @transform_3, window_bounds = array<i64: 1, 32>}, {transform_indices = @transform_4, window_bounds = array<i64: 8, 128>}]} {
    %c0 = arith.constant 0 : index
    %c0_0 = arith.constant 0 : index
    %0 = vector.load %arg1[%c0, %c0_0] : memref<32x1xi32, #tpu.memory_space<vmem>>, vector<32x1xi32>
    %1 = tpu.iota {dimensions = array<i32: 1>} : vector<1x64xi32>
    %2 = vector.broadcast %0 : vector<32x1xi32> to vector<32x64xi32>
    %3 = vector.broadcast %1 : vector<1x64xi32> to vector<32x64xi32>
    %4 = arith.cmpi eq, %2, %3 : vector<32x64xi32>
    %5 = arith.extui %4 : vector<32x64xi1> to vector<32x64xi32>
    %6 = arith.sitofp %5 : vector<32x64xi32> to vector<32x64xf32>
    %c0_1 = arith.constant 0 : index
    %c0_2 = arith.constant 0 : index
    %7 = vector.load %arg2[%c0_1, %c0_2] : memref<64x32xf32, #tpu.memory_space<vmem>>, vector<64x32xf32>
    %cst = arith.constant dense<0.000000e+00> : vector<32x32xf32>
    %8 = tpu.matmul %6, %7, %cst {dimension_numbers = #tpu.dot_dimension_numbers<[1], [0], [0], [1], [0, 0, 1, 1], [], []>} : vector<32x64xf32>, vector<64x32xf32>, vector<32x32xf32> -> vector<32x32xf32>
    %c0_3 = arith.constant 0 : index
    %c0_4 = arith.constant 0 : index
    %9 = vector.load %arg3[%c0_3, %c0_4] : memref<1x32xf32, #tpu.memory_space<vmem>>, vector<1x32xf32>
    %c0_5 = arith.constant 0 : index
    %c0_6 = arith.constant 0 : index
    %10 = vector.load %arg4[%c0_5, %c0_6] : memref<1x32xf32, #tpu.memory_space<vmem>>, vector<1x32xf32>
    %cst_7 = arith.constant dense<0.000000e+00> : vector<32xf32>
    %11 = vector.multi_reduction <add>, %8, %cst_7 [1] : vector<32x32xf32> to vector<32xf32>
    %12 = vector.shape_cast %11 : vector<32xf32> to vector<32x1xf32>
    %cst_8 = arith.constant 3.125000e-02 : f32
    %13 = vector.broadcast %cst_8 : f32 to vector<32x1xf32>
    %14 = arith.mulf %12, %13 : vector<32x1xf32>
    %15 = vector.broadcast %14 : vector<32x1xf32> to vector<32x32xf32>
    %16 = arith.subf %8, %15 : vector<32x32xf32>
    %17 = arith.mulf %16, %16 : vector<32x32xf32>
    %cst_9 = arith.constant dense<0.000000e+00> : vector<32xf32>
    %18 = vector.multi_reduction <add>, %17, %cst_9 [1] : vector<32x32xf32> to vector<32xf32>
    %19 = vector.shape_cast %18 : vector<32xf32> to vector<32x1xf32>
    %cst_10 = arith.constant 3.125000e-02 : f32
    %20 = vector.broadcast %cst_10 : f32 to vector<32x1xf32>
    %21 = arith.mulf %19, %20 : vector<32x1xf32>
    %cst_11 = arith.constant 9.99999974E-6 : f32
    %22 = vector.broadcast %cst_11 : f32 to vector<32x1xf32>
    %23 = arith.addf %21, %22 : vector<32x1xf32>
    %24 = math.rsqrt %23 : vector<32x1xf32>
    %25 = vector.broadcast %24 : vector<32x1xf32> to vector<32x32xf32>
    %26 = arith.mulf %16, %25 : vector<32x32xf32>
    %27 = vector.broadcast %9 : vector<1x32xf32> to vector<32x32xf32>
    %28 = arith.mulf %26, %27 : vector<32x32xf32>
    %29 = vector.broadcast %10 : vector<1x32xf32> to vector<32x32xf32>
    %30 = arith.addf %28, %29 : vector<32x32xf32>
    %31 = tpu.iota {dimensions = array<i32: 0>} : vector<8x32xi32>
    %32 = tpu.iota {dimensions = array<i32: 1>} : vector<8x32xi32>
    %c4_i32 = arith.constant 4 : i32
    %33 = vector.broadcast %c4_i32 : i32 to vector<8x32xi32>
    %34 = arith.muli %31, %33 : vector<8x32xi32>
    %c0_i32 = arith.constant 0 : i32
    %35 = vector.broadcast %c0_i32 : i32 to vector<8x32xi32>
    %36 = arith.addi %34, %35 : vector<8x32xi32>
    %37 = arith.cmpi eq, %32, %36 : vector<8x32xi32>
    %38 = arith.extui %37 : vector<8x32xi1> to vector<8x32xi32>
    %39 = arith.sitofp %38 : vector<8x32xi32> to vector<8x32xf32>
    %cst_12 = arith.constant dense<0.000000e+00> : vector<8x32xf32>
    %40 = tpu.matmul %39, %30, %cst_12 {dimension_numbers = #tpu.dot_dimension_numbers<[1], [0], [0], [1], [0, 0, 1, 1], [], []>} : vector<8x32xf32>, vector<32x32xf32>, vector<8x32xf32> -> vector<8x32xf32>
    %c0_13 = arith.constant 0 : index
    %c0_14 = arith.constant 0 : index
    %41 = vector.load %arg5[%c0_13, %c0_14] : memref<8x128xf32, #tpu.memory_space<vmem>>, vector<8x32xf32>
    tpu.vector_store %arg5[%c0_13, %c0_14], %40 {strides = array<i32>} : memref<8x128xf32, #tpu.memory_space<vmem>>, vector<8x32xf32>,
    %c4_i32_15 = arith.constant 4 : i32
    %42 = vector.broadcast %c4_i32_15 : i32 to vector<8x32xi32>
    %43 = arith.muli %31, %42 : vector<8x32xi32>
    %c1_i32 = arith.constant 1 : i32
    %44 = vector.broadcast %c1_i32 : i32 to vector<8x32xi32>
    %45 = arith.addi %43, %44 : vector<8x32xi32>
    %46 = arith.cmpi eq, %32, %45 : vector<8x32xi32>
    %47 = arith.extui %46 : vector<8x32xi1> to vector<8x32xi32>
    %48 = arith.sitofp %47 : vector<8x32xi32> to vector<8x32xf32>
    %cst_16 = arith.constant dense<0.000000e+00> : vector<8x32xf32>
    %49 = tpu.matmul %48, %30, %cst_16 {dimension_numbers = #tpu.dot_dimension_numbers<[1], [0], [0], [1], [0, 0, 1, 1], [], []>} : vector<8x32xf32>, vector<32x32xf32>, vector<8x32xf32> -> vector<8x32xf32>
    %c0_17 = arith.constant 0 : index
    %c32 = arith.constant 32 : index
    %50 = vector.load %arg5[%c0_17, %c32] : memref<8x128xf32, #tpu.memory_space<vmem>>, vector<8x32xf32>
    tpu.vector_store %arg5[%c0_17, %c32], %49 {strides = array<i32>} : memref<8x128xf32, #tpu.memory_space<vmem>>, vector<8x32xf32>,
    %c4_i32_18 = arith.constant 4 : i32
    %51 = vector.broadcast %c4_i32_18 : i32 to vector<8x32xi32>
    %52 = arith.muli %31, %51 : vector<8x32xi32>
    %c2_i32 = arith.constant 2 : i32
    %53 = vector.broadcast %c2_i32 : i32 to vector<8x32xi32>
    %54 = arith.addi %52, %53 : vector<8x32xi32>
    %55 = arith.cmpi eq, %32, %54 : vector<8x32xi32>
    %56 = arith.extui %55 : vector<8x32xi1> to vector<8x32xi32>
    %57 = arith.sitofp %56 : vector<8x32xi32> to vector<8x32xf32>
    %cst_19 = arith.constant dense<0.000000e+00> : vector<8x32xf32>
    %58 = tpu.matmul %57, %30, %cst_19 {dimension_numbers = #tpu.dot_dimension_numbers<[1], [0], [0], [1], [0, 0, 1, 1], [], []>} : vector<8x32xf32>, vector<32x32xf32>, vector<8x32xf32> -> vector<8x32xf32>
    %c0_20 = arith.constant 0 : index
    %c64 = arith.constant 64 : index
    %59 = vector.load %arg5[%c0_20, %c64] : memref<8x128xf32, #tpu.memory_space<vmem>>, vector<8x32xf32>
    tpu.vector_store %arg5[%c0_20, %c64], %58 {strides = array<i32>} : memref<8x128xf32, #tpu.memory_space<vmem>>, vector<8x32xf32>,
    %c4_i32_21 = arith.constant 4 : i32
    %60 = vector.broadcast %c4_i32_21 : i32 to vector<8x32xi32>
    %61 = arith.muli %31, %60 : vector<8x32xi32>
    %c3_i32 = arith.constant 3 : i32
    %62 = vector.broadcast %c3_i32 : i32 to vector<8x32xi32>
    %63 = arith.addi %61, %62 : vector<8x32xi32>
    %64 = arith.cmpi eq, %32, %63 : vector<8x32xi32>
    %65 = arith.extui %64 : vector<8x32xi1> to vector<8x32xi32>
    %66 = arith.sitofp %65 : vector<8x32xi32> to vector<8x32xf32>
    %cst_22 = arith.constant dense<0.000000e+00> : vector<8x32xf32>
    %67 = tpu.matmul %66, %30, %cst_22 {dimension_numbers = #tpu.dot_dimension_numbers<[1], [0], [0], [1], [0, 0, 1, 1], [], []>} : vector<8x32xf32>, vector<32x32xf32>, vector<8x32xf32> -> vector<8x32xf32>
    %c0_23 = arith.constant 0 : index
    %c96 = arith.constant 96 : index
    %68 = vector.load %arg5[%c0_23, %c96] : memref<8x128xf32, #tpu.memory_space<vmem>>, vector<8x32xf32>
    tpu.vector_store %arg5[%c0_23, %c96], %67 {strides = array<i32>} : memref<8x128xf32, #tpu.memory_space<vmem>>, vector<8x32xf32>,
    return
  }
  func.func @transform_0(%arg0: i32) -> (i32, i32) {
    %c0_i32 = arith.constant 0 : i32
    %c0_i32_0 = arith.constant 0 : i32
    return %arg0, %c0_i32 : i32, i32
  }
  func.func @transform_1(%arg0: i32) -> (i32, i32) {
    %c0_i32 = arith.constant 0 : i32
    %c0_i32_0 = arith.constant 0 : i32
    %c0_i32_1 = arith.constant 0 : i32
    return %c0_i32, %c0_i32_0 : i32, i32
  }
  func.func @transform_2(%arg0: i32) -> (i32, i32) {
    %c0_i32 = arith.constant 0 : i32
    %c0_i32_0 = arith.constant 0 : i32
    %c0_i32_1 = arith.constant 0 : i32
    return %c0_i32, %c0_i32_0 : i32, i32
  }
  func.func @transform_3(%arg0: i32) -> (i32, i32) {
    %c0_i32 = arith.constant 0 : i32
    %c0_i32_0 = arith.constant 0 : i32
    %c0_i32_1 = arith.constant 0 : i32
    return %c0_i32, %c0_i32_0 : i32, i32
  }
  func.func @transform_4(%arg0: i32) -> (i32, i32) {
    %c0_i32 = arith.constant 0 : i32
    %c0_i32_0 = arith.constant 0 : i32
    return %arg0, %c0_i32 : i32, i32
  }
}

</mosaic_0001>

<llo_original>
// kernel: embedding_block_forward.1
$region0: #{embedding_block_forward.1}
  #allocation0 [shape = 'u32[]', space=smem, size = 0x4, offset = 0x4, fixed_abs, tag = 'smem constant byte address 0x4 - core index']
  #allocation1 [shape = 'u32[144,128]{1,0:T(1,128)}', space=vmem, size = 0x12000, scoped, tag = 'internal scratch']
  %s0 = inlined_call_operand.vmem [shape: s32[32,1], index: 0, kind: input, shape index: {}]
  %s1 = inlined_call_operand.vmem [shape: f32[64,32], index: 1, kind: input, shape index: {}]
  %s2 = inlined_call_operand.vmem [shape: f32[1,32], index: 2, kind: input, shape index: {}]
  %s3 = inlined_call_operand.vmem [shape: f32[1,32], index: 3, kind: input, shape index: {}]
  %s4 = inlined_call_operand.vmem [shape: f32[8,128], index: 4, kind: output, shape index: {}]
  %s5 = sld [smem:[#allocation0]]
  $region26: #{embedding_block_forward.1} parent=0
    _
  %s7 = ssub.s32 1, %s5
  %s8 = scalar_select 0, %s7, %s5
  // Predicated region
  $region2: #{embedding_block_forward.1} parent=0 // pred_check
    _
  $region3: #{embedding_block_forward.1} parent=0 // pred_check_branch
    %10 = sbr.rel (0) target = $region5
  $region4: #{embedding_block_forward.1} parent=0 // pred_region
    _
  $region5: #{embedding_block_forward.1} parent=0 // pred_fallthru
    _
  // Predicated region
  $region6: #{embedding_block_forward.1} parent=0 // pred_check
    _
  $region7: #{embedding_block_forward.1} parent=0 // pred_check_branch
    %12 = sbr.rel (0) target = $region9
  $region8: #{embedding_block_forward.1} parent=0 // pred_region
    _
  $region9: #{embedding_block_forward.1} parent=0 // pred_fallthru
    _
  // Predicated region
  $region10: #{embedding_block_forward.1} parent=0 // pred_check
    _
  $region11: #{embedding_block_forward.1} parent=0 // pred_check_branch
    %14 = sbr.rel (0) target = $region13
  $region12: #{embedding_block_forward.1} parent=0 // pred_region
    _
  $region13: #{embedding_block_forward.1} parent=0 // pred_fallthru
    _
  // Predicated region
  $region14: #{embedding_block_forward.1} parent=0 // pred_check
    _
  $region15: #{embedding_block_forward.1} parent=0 // pred_check_branch
    %16 = sbr.rel (0) target = $region17
  $region16: #{embedding_block_forward.1} parent=0 // pred_region
    _
  $region17: #{embedding_block_forward.1} parent=0 // pred_fallthru
    _
  %v17 = vld [vmem:[%s0] sm:$0xff]
  %v18 = vld [vmem:[%s0 + $0x8] sm:$0xff]
  %v19 = vld [vmem:[%s0 + $0x10] sm:$0xff]
  %v20 = vld [vmem:[%s0 + $0x18] sm:$0xff]
  %v21 = vlaneseq
  %v22 = vand.u32 %v21, 127
  %23 = vset.pattern.permute.xlu0 0
  %24 = vperm.xlu0 %23, %v17
  %v25 = vpop.permute.xlu0 %24
  %26 = vset.pattern.permute.xlu0 0
  %27 = vperm.xlu0 %26, %v18
  %v28 = vpop.permute.xlu0 %27
  %29 = vset.pattern.permute.xlu0 0
  %30 = vperm.xlu0 %29, %v19
  %v31 = vpop.permute.xlu0 %30
  %32 = vset.pattern.permute.xlu0 0
  %33 = vperm.xlu0 %32, %v20
  %v34 = vpop.permute.xlu0 %33
  %vm35 = vcmp.eq.s32.totalorder %v25, %v22
  %vm36 = vcmp.eq.s32.totalorder %v28, %v22
  %vm37 = vcmp.eq.s32.totalorder %v31, %v22
  %vm38 = vcmp.eq.s32.totalorder %v34, %v22
  %v39 = vsel %vm35, 1, 0
  %v40 = vsel %vm36, 1, 0
  %v41 = vsel %vm37, 1, 0
  %v42 = vsel %vm38, 1, 0
  %v43 = vcvt.s32.f32 %v39
  %v44 = vcvt.s32.f32 %v40
  %v45 = vcvt.s32.f32 %v41
  %v46 = vcvt.s32.f32 %v42
  %v47 = vld [vmem:[%s1] sm:$0xff]
  %v48 = vld [vmem:[%s1 + $0x8] sm:$0xff]
  %v49 = vld [vmem:[%s1 + $0x10] sm:$0xff]
  %v50 = vld [vmem:[%s1 + $0x18] sm:$0xff]
  %v51 = vld [vmem:[%s1 + $0x20] sm:$0xff]
  %v52 = vld [vmem:[%s1 + $0x28] sm:$0xff]
  %v53 = vld [vmem:[%s1 + $0x30] sm:$0xff]
  %v54 = vld [vmem:[%s1 + $0x38] sm:$0xff]
  %vm55 = vcmask 523264
  %v57 = vsel %vm55, %v43, 0
  %v60 = vsel %vm55, %v44, 0
  %v63 = vsel %vm55, %v45, 0
  %v66 = vsel %vm55, %v46, 0
  %68 = vmatprep.subr.mxu0 0.0
  %69 = vmatpush1.msra.mxu0 0.0
  %70 = vmatprep.subr.mxu0 0.0
  %71 = vmatpush1.msra.mxu0 0.0
  %72 = vmatprep.subr.mxu0 0.0
  %73 = vmatpush1.msra.mxu0 0.0
  %74 = vmatprep.subr.mxu0 0.0
  %75 = vmatpush1.msra.mxu0 0.0
  %76 = vmatprep.subr.mxu0 0.0
  %77 = vmatpush1.msra.mxu0 0.0
  %78 = vmatprep.subr.mxu0 0.0
  %79 = vmatpush1.msra.mxu0 0.0
  %80 = vmatprep.subr.mxu0 0.0
  %81 = vmatpush1.msra.mxu0 0.0
  %82 = vmatprep.subr.mxu0 0.0
  %83 = vmatpush1.msra.mxu0 0.0
  %84 = vmatprep.subr.mxu0 0.0
  %85 = vmatpush1.msra.mxu0 %v54
  %86 = vmatprep.subr.mxu0 0.0
  %87 = vmatpush1.msra.mxu0 %v53
  %88 = vmatprep.subr.mxu0 0.0
  %89 = vmatpush1.msra.mxu0 %v52
  %90 = vmatprep.subr.mxu0 0.0
  %91 = vmatpush1.msra.mxu0 %v51
  %92 = vmatprep.subr.mxu0 0.0
  %93 = vmatpush1.msra.mxu0 %v50
  %94 = vmatprep.subr.mxu0 0.0
  %95 = vmatpush1.msra.mxu0 %v49
  %96 = vmatprep.subr.mxu0 0.0
  %97 = vmatpush1.msra.mxu0 %v48
  %98 = vmatprep.subr.mxu0 0.0
  %99 = vmatpush1.msra.mxu0 %v47
  %100 = vmatprep.subr.mxu0 0.0
  %101 = vmatpush2.msra.mxu0 0.0
  %102 = vmatprep.subr.mxu0 0.0
  %103 = vmatpush2.msra.mxu0 0.0
  %104 = vmatprep.subr.mxu0 0.0
  %105 = vmatpush2.msra.mxu0 0.0
  %106 = vmatprep.subr.mxu0 0.0
  %107 = vmatpush2.msra.mxu0 0.0
  %108 = vmatprep.subr.mxu0 0.0
  %109 = vmatpush2.msra.mxu0 0.0
  %110 = vmatprep.subr.mxu0 0.0
  %111 = vmatpush2.msra.mxu0 0.0
  %112 = vmatprep.subr.mxu0 0.0
  %113 = vmatpush2.msra.mxu0 0.0
  %114 = vmatprep.subr.mxu0 0.0
  %115 = vmatpush2.msra.mxu0 0.0
  %116 = vmatprep.subr.mxu0 0.0
  %117 = vmatpush2.msra.mxu0 0.0
  %118 = vmatprep.subr.mxu0 0.0
  %119 = vmatpush2.msra.mxu0 0.0
  %120 = vmatprep.subr.mxu0 0.0
  %121 = vmatpush2.msra.mxu0 0.0
  %122 = vmatprep.subr.mxu0 0.0
  %123 = vmatpush2.msra.mxu0 0.0
  %124 = vmatprep.subr.mxu0 0.0
  %125 = vmatpush2.msra.mxu0 0.0
  %126 = vmatprep.subr.mxu0 0.0
  %127 = vmatpush2.msra.mxu0 0.0
  %128 = vmatprep.subr.mxu0 0.0
  %129 = vmatpush2.msra.mxu0 0.0
  %130 = vmatprep.subr.mxu0 0.0
  %131 = vmatpush2.msra.mxu0 0.0
  %132 = vmatprep.mubr.f32.mxu0 0.0
  %133 = vmatmul.mubr.f32.gmra.mxu0 %v57
  %v134 = vpop.f32.mrf.mxu0
  %v135 = vadd.f32 0.0, %v134
  %v136 = vpop.f32.mrf.mxu0
  %137 = vmatprep.mubr.f32.mxu0 0.0
  %138 = vmatmul.mubr.f32.gmra.mxu0 %v60
  %v139 = vpop.f32.mrf.mxu0
  %v140 = vadd.f32 0.0, %v139
  %v141 = vpop.f32.mrf.mxu0
  %142 = vmatprep.mubr.f32.mxu0 0.0
  %143 = vmatmul.mubr.f32.gmra.mxu0 %v63
  %v144 = vpop.f32.mrf.mxu0
  %v145 = vadd.f32 0.0, %v144
  %v146 = vpop.f32.mrf.mxu0
  %147 = vmatprep.mubr.f32.mxu0 0.0
  %148 = vmatmul.mubr.f32.gmra.mxu0 %v66
  %v149 = vpop.f32.mrf.mxu0
  %v150 = vadd.f32 0.0, %v149
  %v151 = vpop.f32.mrf.mxu0
  %152 = vdwg.mxu0
  %v153 = vld [vmem:[%s2] sm:$0x1]
  %v154 = vld [vmem:[%s3] sm:$0x1]
  %vm155 = vcmask 261120
  %v156 = vsel %vm155, %v135, 0.0
  %157 = vadd.xlane.f32.xlu0 %v156
  %v158 = vpop.xlane.xlu0 %157
  %v159 = vsel %vm155, %v140, 0.0
  %160 = vadd.xlane.f32.xlu0 %v159
  %v161 = vpop.xlane.xlu0 %160
  %v162 = vsel %vm155, %v145, 0.0
  %163 = vadd.xlane.f32.xlu0 %v162
  %v164 = vpop.xlane.xlu0 %163
  %v165 = vsel %vm155, %v150, 0.0
  %166 = vadd.xlane.f32.xlu0 %v165
  %v167 = vpop.xlane.xlu0 %166
  %v168 = vmul.f32 %v158, 0.03125
  %v169 = vmul.f32 %v161, 0.03125
  %v170 = vmul.f32 %v164, 0.03125
  %v171 = vmul.f32 %v167, 0.03125
  %v172 = vsub.f32 %v135, %v168
  %v173 = vsub.f32 %v140, %v169
  %v174 = vsub.f32 %v145, %v170
  %v175 = vsub.f32 %v150, %v171
  %v176 = vmul.f32 %v172, %v172
  %v177 = vmul.f32 %v173, %v173
  %v178 = vmul.f32 %v174, %v174
  %v179 = vmul.f32 %v175, %v175
  %v180 = vsel %vm155, %v176, 0.0
  %181 = vadd.xlane.f32.xlu0 %v180
  %v182 = vpop.xlane.xlu0 %181
  %v183 = vsel %vm155, %v177, 0.0
  %184 = vadd.xlane.f32.xlu0 %v183
  %v185 = vpop.xlane.xlu0 %184
  %v186 = vsel %vm155, %v178, 0.0
  %187 = vadd.xlane.f32.xlu0 %v186
  %v188 = vpop.xlane.xlu0 %187
  %v189 = vsel %vm155, %v179, 0.0
  %190 = vadd.xlane.f32.xlu0 %v189
  %v191 = vpop.xlane.xlu0 %190
  %v192 = vmul.f32 %v182, 0.03125
  %v193 = vmul.f32 %v185, 0.03125
  %v194 = vmul.f32 %v188, 0.03125
  %v195 = vmul.f32 %v191, 0.03125
  %v196 = vadd.f32 %v192, 1e-05
  %v197 = vadd.f32 %v193, 1e-05
  %v198 = vadd.f32 %v194, 1e-05
  %v199 = vadd.f32 %v195, 1e-05
  %v200 = vrsqrt.pop %v196
  %v201 = vrsqrt.pop %v197
  %v202 = vrsqrt.pop %v198
  %v203 = vrsqrt.pop %v199
  %v204 = vmul.f32 %v172, %v200
  %v205 = vmul.f32 %v173, %v201
  %v206 = vmul.f32 %v174, %v202
  %v207 = vmul.f32 %v175, %v203
  %v209 = vlaneseq
  %v210 = vshrl.u32 %v209, 7
  %v211 = vsub.s32 0, %v210
  %v212 = vrot.slane %v153, %v211
  %v214 = vmul.f32 %v204, %v212
  %v215 = vmul.f32 %v205, %v212
  %v216 = vmul.f32 %v206, %v212
  %v217 = vmul.f32 %v207, %v212
  %v219 = vlaneseq
  %v220 = vshrl.u32 %v219, 7
  %v221 = vsub.s32 0, %v220
  %v222 = vrot.slane %v154, %v221
  %v224 = vadd.f32 %v214, %v222
  %v225 = vadd.f32 %v215, %v222
  %v226 = vadd.f32 %v216, %v222
  %v227 = vadd.f32 %v217, %v222
  %v228 = vlaneseq
  %v229 = vshrl.u32 %v228, 7
  %v230 = vmul.u32 %v229, 4
  %vm231 = vcmp.eq.s32.totalorder %v22, %v230
  %v232 = vsel %vm231, 1, 0
  %v233 = vcvt.s32.f32 %v232
  %v235 = vsel %vm155, %v233, 0
  %237 = vmatprep.subr.mxu0 0.0
  %238 = vmatpush1.msra.mxu0 0.0
  %239 = vmatprep.subr.mxu0 0.0
  %240 = vmatpush1.msra.mxu0 0.0
  %241 = vmatprep.subr.mxu0 0.0
  %242 = vmatpush1.msra.mxu0 0.0
  %243 = vmatprep.subr.mxu0 0.0
  %244 = vmatpush1.msra.mxu0 0.0
  %245 = vmatprep.subr.mxu0 0.0
  %246 = vmatpush1.msra.mxu0 0.0
  %247 = vmatprep.subr.mxu0 0.0
  %248 = vmatpush1.msra.mxu0 0.0
  %249 = vmatprep.subr.mxu0 0.0
  %250 = vmatpush1.msra.mxu0 0.0
  %251 = vmatprep.subr.mxu0 0.0
  %252 = vmatpush1.msra.mxu0 0.0
  %253 = vmatprep.subr.mxu0 0.0
  %254 = vmatpush1.msra.mxu0 0.0
  %255 = vmatprep.subr.mxu0 0.0
  %256 = vmatpush1.msra.mxu0 0.0
  %257 = vmatprep.subr.mxu0 0.0
  %258 = vmatpush1.msra.mxu0 0.0
  %259 = vmatprep.subr.mxu0 0.0
  %260 = vmatpush1.msra.mxu0 0.0
  %261 = vmatprep.subr.mxu0 0.0
  %262 = vmatpush1.msra.mxu0 %v227
  %263 = vmatprep.subr.mxu0 0.0
  %264 = vmatpush1.msra.mxu0 %v226
  %265 = vmatprep.subr.mxu0 0.0
  %266 = vmatpush1.msra.mxu0 %v225
  %267 = vmatprep.subr.mxu0 0.0
  %268 = vmatpush1.msra.mxu0 %v224
  %269 = vmatprep.subr.mxu0 0.0
  %270 = vmatpush2.msra.mxu0 0.0
  %271 = vmatprep.subr.mxu0 0.0
  %272 = vmatpush2.msra.mxu0 0.0
  %273 = vmatprep.subr.mxu0 0.0
  %274 = vmatpush2.msra.mxu0 0.0
  %275 = vmatprep.subr.mxu0 0.0
  %276 = vmatpush2.msra.mxu0 0.0
  %277 = vmatprep.subr.mxu0 0.0
  %278 = vmatpush2.msra.mxu0 0.0
  %279 = vmatprep.subr.mxu0 0.0
  %280 = vmatpush2.msra.mxu0 0.0
  %281 = vmatprep.subr.mxu0 0.0
  %282 = vmatpush2.msra.mxu0 0.0
  %283 = vmatprep.subr.mxu0 0.0
  %284 = vmatpush2.msra.mxu0 0.0
  %285 = vmatprep.subr.mxu0 0.0
  %286 = vmatpush2.msra.mxu0 0.0
  %287 = vmatprep.subr.mxu0 0.0
  %288 = vmatpush2.msra.mxu0 0.0
  %289 = vmatprep.subr.mxu0 0.0
  %290 = vmatpush2.msra.mxu0 0.0
  %291 = vmatprep.subr.mxu0 0.0
  %292 = vmatpush2.msra.mxu0 0.0
  %293 = vmatprep.subr.mxu0 0.0
  %294 = vmatpush2.msra.mxu0 0.0
  %295 = vmatprep.subr.mxu0 0.0
  %296 = vmatpush2.msra.mxu0 0.0
  %297 = vmatprep.subr.mxu0 0.0
  %298 = vmatpush2.msra.mxu0 0.0
  %299 = vmatprep.subr.mxu0 0.0
  %300 = vmatpush2.msra.mxu0 0.0
  %301 = vmatprep.mubr.f32.mxu0 0.0
  %302 = vmatmul.mubr.f32.gmra.mxu0 %v235
  %v303 = vpop.f32.mrf.mxu0
  %v304 = vadd.f32 0.0, %v303
  %v305 = vpop.f32.mrf.mxu0
  %306 = vdwg.mxu0
  %307 = vst.msk [vmem:[%s4] sm:$0xff] %vm155, %v304
  %v308 = vadd.s32 %v230, 1
  %vm309 = vcmp.eq.s32.totalorder %v22, %v308
  %v310 = vsel %vm309, 1, 0
  %v311 = vcvt.s32.f32 %v310
  %v313 = vsel %vm155, %v311, 0
  %315 = vmatprep.subr.mxu0 0.0
  %316 = vmatpush1.msra.mxu0 0.0
  %317 = vmatprep.subr.mxu0 0.0
  %318 = vmatpush1.msra.mxu0 0.0
  %319 = vmatprep.subr.mxu0 0.0
  %320 = vmatpush1.msra.mxu0 0.0
  %321 = vmatprep.subr.mxu0 0.0
  %322 = vmatpush1.msra.mxu0 0.0
  %323 = vmatprep.subr.mxu0 0.0
  %324 = vmatpush1.msra.mxu0 0.0
  %325 = vmatprep.subr.mxu0 0.0
  %326 = vmatpush1.msra.mxu0 0.0
  %327 = vmatprep.subr.mxu0 0.0
  %328 = vmatpush1.msra.mxu0 0.0
  %329 = vmatprep.subr.mxu0 0.0
  %330 = vmatpush1.msra.mxu0 0.0
  %331 = vmatprep.subr.mxu0 0.0
  %332 = vmatpush1.msra.mxu0 0.0
  %333 = vmatprep.subr.mxu0 0.0
  %334 = vmatpush1.msra.mxu0 0.0
  %335 = vmatprep.subr.mxu0 0.0
  %336 = vmatpush1.msra.mxu0 0.0
  %337 = vmatprep.subr.mxu0 0.0
  %338 = vmatpush1.msra.mxu0 0.0
  %339 = vmatprep.subr.mxu0 0.0
  %340 = vmatpush1.msra.mxu0 %v227
  %341 = vmatprep.subr.mxu0 0.0
  %342 = vmatpush1.msra.mxu0 %v226
  %343 = vmatprep.subr.mxu0 0.0
  %344 = vmatpush1.msra.mxu0 %v225
  %345 = vmatprep.subr.mxu0 0.0
  %346 = vmatpush1.msra.mxu0 %v224
  %347 = vmatprep.subr.mxu0 0.0
  %348 = vmatpush2.msra.mxu0 0.0
  %349 = vmatprep.subr.mxu0 0.0
  %350 = vmatpush2.msra.mxu0 0.0
  %351 = vmatprep.subr.mxu0 0.0
  %352 = vmatpush2.msra.mxu0 0.0
  %353 = vmatprep.subr.mxu0 0.0
  %354 = vmatpush2.msra.mxu0 0.0
  %355 = vmatprep.subr.mxu0 0.0
  %356 = vmatpush2.msra.mxu0 0.0
  %357 = vmatprep.subr.mxu0 0.0
  %358 = vmatpush2.msra.mxu0 0.0
  %359 = vmatprep.subr.mxu0 0.0
  %360 = vmatpush2.msra.mxu0 0.0
  %361 = vmatprep.subr.mxu0 0.0
  %362 = vmatpush2.msra.mxu0 0.0
  %363 = vmatprep.subr.mxu0 0.0
  %364 = vmatpush2.msra.mxu0 0.0
  %365 = vmatprep.subr.mxu0 0.0
  %366 = vmatpush2.msra.mxu0 0.0
  %367 = vmatprep.subr.mxu0 0.0
  %368 = vmatpush2.msra.mxu0 0.0
  %369 = vmatprep.subr.mxu0 0.0
  %370 = vmatpush2.msra.mxu0 0.0
  %371 = vmatprep.subr.mxu0 0.0
  %372 = vmatpush2.msra.mxu0 0.0
  %373 = vmatprep.subr.mxu0 0.0
  %374 = vmatpush2.msra.mxu0 0.0
  %375 = vmatprep.subr.mxu0 0.0
  %376 = vmatpush2.msra.mxu0 0.0
  %377 = vmatprep.subr.mxu0 0.0
  %378 = vmatpush2.msra.mxu0 0.0
  %379 = vmatprep.mubr.f32.mxu0 0.0
  %380 = vmatmul.mubr.f32.gmra.mxu0 %v313
  %v381 = vpop.f32.mrf.mxu0
  %v382 = vadd.f32 0.0, %v381
  %v383 = vpop.f32.mrf.mxu0
  %384 = vdwg.mxu0
  %386 = vrot.lane.b32.xlu0 %v382, 32
  %v387 = vpop.permute.xlu0 %386
  %vm389 = vcmask 523520
  %390 = vst.msk [vmem:[%s4] sm:$0xff] %vm389, %v387
  %v391 = vadd.s32 %v230, 2
  %vm392 = vcmp.eq.s32.totalorder %v22, %v391
  %v393 = vsel %vm392, 1, 0
  %v394 = vcvt.s32.f32 %v393
  %v396 = vsel %vm155, %v394, 0
  %398 = vmatprep.subr.mxu0 0.0
  %399 = vmatpush1.msra.mxu0 0.0
  %400 = vmatprep.subr.mxu0 0.0
  %401 = vmatpush1.msra.mxu0 0.0
  %402 = vmatprep.subr.mxu0 0.0
  %403 = vmatpush1.msra.mxu0 0.0
  %404 = vmatprep.subr.mxu0 0.0
  %405 = vmatpush1.msra.mxu0 0.0
  %406 = vmatprep.subr.mxu0 0.0
  %407 = vmatpush1.msra.mxu0 0.0
  %408 = vmatprep.subr.mxu0 0.0
  %409 = vmatpush1.msra.mxu0 0.0
  %410 = vmatprep.subr.mxu0 0.0
  %411 = vmatpush1.msra.mxu0 0.0
  %412 = vmatprep.subr.mxu0 0.0
  %413 = vmatpush1.msra.mxu0 0.0
  %414 = vmatprep.subr.mxu0 0.0
  %415 = vmatpush1.msra.mxu0 0.0
  %416 = vmatprep.subr.mxu0 0.0
  %417 = vmatpush1.msra.mxu0 0.0
  %418 = vmatprep.subr.mxu0 0.0
  %419 = vmatpush1.msra.mxu0 0.0
  %420 = vmatprep.subr.mxu0 0.0
  %421 = vmatpush1.msra.mxu0 0.0
  %422 = vmatprep.subr.mxu0 0.0
  %423 = vmatpush1.msra.mxu0 %v227
  %424 = vmatprep.subr.mxu0 0.0
  %425 = vmatpush1.msra.mxu0 %v226
  %426 = vmatprep.subr.mxu0 0.0
  %427 = vmatpush1.msra.mxu0 %v225
  %428 = vmatprep.subr.mxu0 0.0
  %429 = vmatpush1.msra.mxu0 %v224
  %430 = vmatprep.subr.mxu0 0.0
  %431 = vmatpush2.msra.mxu0 0.0
  %432 = vmatprep.subr.mxu0 0.0
  %433 = vmatpush2.msra.mxu0 0.0
  %434 = vmatprep.subr.mxu0 0.0
  %435 = vmatpush2.msra.mxu0 0.0
  %436 = vmatprep.subr.mxu0 0.0
  %437 = vmatpush2.msra.mxu0 0.0
  %438 = vmatprep.subr.mxu0 0.0
  %439 = vmatpush2.msra.mxu0 0.0
  %440 = vmatprep.subr.mxu0 0.0
  %441 = vmatpush2.msra.mxu0 0.0
  %442 = vmatprep.subr.mxu0 0.0
  %443 = vmatpush2.msra.mxu0 0.0
  %444 = vmatprep.subr.mxu0 0.0
  %445 = vmatpush2.msra.mxu0 0.0
  %446 = vmatprep.subr.mxu0 0.0
  %447 = vmatpush2.msra.mxu0 0.0
  %448 = vmatprep.subr.mxu0 0.0
  %449 = vmatpush2.msra.mxu0 0.0
  %450 = vmatprep.subr.mxu0 0.0
  %451 = vmatpush2.msra.mxu0 0.0
  %452 = vmatprep.subr.mxu0 0.0
  %453 = vmatpush2.msra.mxu0 0.0
  %454 = vmatprep.subr.mxu0 0.0
  %455 = vmatpush2.msra.mxu0 0.0
  %456 = vmatprep.subr.mxu0 0.0
  %457 = vmatpush2.msra.mxu0 0.0
  %458 = vmatprep.subr.mxu0 0.0
  %459 = vmatpush2.msra.mxu0 0.0
  %460 = vmatprep.subr.mxu0 0.0
  %461 = vmatpush2.msra.mxu0 0.0
  %462 = vmatprep.mubr.f32.mxu0 0.0
  %463 = vmatmul.mubr.f32.gmra.mxu0 %v396
  %v464 = vpop.f32.mrf.mxu0
  %v465 = vadd.f32 0.0, %v464
  %v466 = vpop.f32.mrf.mxu0
  %467 = vdwg.mxu0
  %469 = vrot.lane.b32.xlu0 %v465, 64
  %v470 = vpop.permute.xlu0 %469
  %vm472 = vcmask 785920
  %473 = vst.msk [vmem:[%s4] sm:$0xff] %vm472, %v470
  %v474 = vadd.s32 %v230, 3
  %vm475 = vcmp.eq.s32.totalorder %v22, %v474
  %v476 = vsel %vm475, 1, 0
  %v477 = vcvt.s32.f32 %v476
  %v479 = vsel %vm155, %v477, 0
  %481 = vmatprep.subr.mxu0 0.0
  %482 = vmatpush1.msra.mxu0 0.0
  %483 = vmatprep.subr.mxu0 0.0
  %484 = vmatpush1.msra.mxu0 0.0
  %485 = vmatprep.subr.mxu0 0.0
  %486 = vmatpush1.msra.mxu0 0.0
  %487 = vmatprep.subr.mxu0 0.0
  %488 = vmatpush1.msra.mxu0 0.0
  %489 = vmatprep.subr.mxu0 0.0
  %490 = vmatpush1.msra.mxu0 0.0
  %491 = vmatprep.subr.mxu0 0.0
  %492 = vmatpush1.msra.mxu0 0.0
  %493 = vmatprep.subr.mxu0 0.0
  %494 = vmatpush1.msra.mxu0 0.0
  %495 = vmatprep.subr.mxu0 0.0
  %496 = vmatpush1.msra.mxu0 0.0
  %497 = vmatprep.subr.mxu0 0.0
  %498 = vmatpush1.msra.mxu0 0.0
  %499 = vmatprep.subr.mxu0 0.0
  %500 = vmatpush1.msra.mxu0 0.0
  %501 = vmatprep.subr.mxu0 0.0
  %502 = vmatpush1.msra.mxu0 0.0
  %503 = vmatprep.subr.mxu0 0.0
  %504 = vmatpush1.msra.mxu0 0.0
  %505 = vmatprep.subr.mxu0 0.0
  %506 = vmatpush1.msra.mxu0 %v227
  %507 = vmatprep.subr.mxu0 0.0
  %508 = vmatpush1.msra.mxu0 %v226
  %509 = vmatprep.subr.mxu0 0.0
  %510 = vmatpush1.msra.mxu0 %v225
  %511 = vmatprep.subr.mxu0 0.0
  %512 = vmatpush1.msra.mxu0 %v224
  %513 = vmatprep.subr.mxu0 0.0
  %514 = vmatpush2.msra.mxu0 0.0
  %515 = vmatprep.subr.mxu0 0.0
  %516 = vmatpush2.msra.mxu0 0.0
  %517 = vmatprep.subr.mxu0 0.0
  %518 = vmatpush2.msra.mxu0 0.0
  %519 = vmatprep.subr.mxu0 0.0
  %520 = vmatpush2.msra.mxu0 0.0
  %521 = vmatprep.subr.mxu0 0.0
  %522 = vmatpush2.msra.mxu0 0.0
  %523 = vmatprep.subr.mxu0 0.0
  %524 = vmatpush2.msra.mxu0 0.0
  %525 = vmatprep.subr.mxu0 0.0
  %526 = vmatpush2.msra.mxu0 0.0
  %527 = vmatprep.subr.mxu0 0.0
  %528 = vmatpush2.msra.mxu0 0.0
  %529 = vmatprep.subr.mxu0 0.0
  %530 = vmatpush2.msra.mxu0 0.0
  %531 = vmatprep.subr.mxu0 0.0
  %532 = vmatpush2.msra.mxu0 0.0
  %533 = vmatprep.subr.mxu0 0.0
  %534 = vmatpush2.msra.mxu0 0.0
  %535 = vmatprep.subr.mxu0 0.0
  %536 = vmatpush2.msra.mxu0 0.0
  %537 = vmatprep.subr.mxu0 0.0
  %538 = vmatpush2.msra.mxu0 0.0
  %539 = vmatprep.subr.mxu0 0.0
  %540 = vmatpush2.msra.mxu0 0.0
  %541 = vmatprep.subr.mxu0 0.0
  %542 = vmatpush2.msra.mxu0 0.0
  %543 = vmatprep.subr.mxu0 0.0
  %544 = vmatpush2.msra.mxu0 0.0
  %545 = vmatprep.mubr.f32.mxu0 0.0
  %546 = vmatmul.mubr.f32.gmra.mxu0 %v479
  %v547 = vpop.f32.mrf.mxu0
  %v548 = vadd.f32 0.0, %v547
  %v549 = vpop.f32.mrf.mxu0
  %550 = vdwg.mxu0
  %552 = vrot.lane.b32.xlu0 %v548, 96
  %v553 = vpop.permute.xlu0 %552
  %vm555 = vcmask 1048320
  %556 = vst.msk [vmem:[%s4] sm:$0xff] %vm555, %v553
  // Predicated region
  $region18: #{embedding_block_forward.1} parent=0 // pred_check
    _
  $region19: #{embedding_block_forward.1} parent=0 // pred_check_branch
    %558 = sbr.rel (0) target = $region21
  $region20: #{embedding_block_forward.1} parent=0 // pred_region
    _
  $region21: #{embedding_block_forward.1} parent=0 // pred_fallthru
    _
  // Predicated region
  $region22: #{embedding_block_forward.1} parent=0 // pred_check
    _
  $region23: #{embedding_block_forward.1} parent=0 // pred_check_branch
    %560 = sbr.rel (0) target = $region25
  $region24: #{embedding_block_forward.1} parent=0 // pred_region
    _
  $region25: #{embedding_block_forward.1} parent=0 // pred_fallthru
    _

</llo_original>
